<compile_context>
chip_gen: v5e
topology: v5e:2x2
jax: 0.10.0
libtpu: 0.0.40
codegen_flags: <defaults>
</compile_context>

<pallas_src>
import functools

import numpy as np
import jax
import jax.numpy as jnp
from jax import lax
from jax.experimental import pallas as pl
from jax.experimental.pallas import tpu as pltpu


def _round_up(x, m):
    return ((x + m - 1) // m) * m


# --------------------------------------------------------------------------- #
# Kernel
# --------------------------------------------------------------------------- #
def prompt_encoder_kernel(pts_ref, params_ref, out_ref, *, k):
    """pts_ref:    [tm, K]      K = 8 * G, G points per row, 8 values per point
       params_ref: [2K, d_out]  rows [0,K) = W_proj, rows [K,2K) = W_sel
       out_ref:    [tm, d_out]  d_out = 128 (lane-dense)"""
    pts = pts_ref[...]                              # [tm, K]
    w_proj = params_ref[0:k, :]                     # [K, d_out] (static slice)
    w_sel = params_ref[k:2 * k, :]                  # [K, d_out]

    # Fused normalisation + random-fourier projection, block-diagonal per point
    # group.  cos() lanes were phase-folded (+pi/2 on the bias) -> a single sin.
    proj = jnp.dot(pts, w_proj,
                   precision=lax.Precision.HIGHEST,
                   preferred_element_type=jnp.float32)
    # One-hot(label) @ embedding-table rows (also block-diagonal): label select
    # runs on the otherwise idle MXU instead of a 4-deep VPU where-chain.
    sel = jnp.dot(pts, w_sel,
                  precision=lax.Precision.HIGHEST,
                  preferred_element_type=jnp.float32)

    out_ref[...] = jnp.sin(proj) + sel              # single lane-dense store


# --------------------------------------------------------------------------- #
# Wrapper-side packing
# --------------------------------------------------------------------------- #
def _pack_points(coords, labels, G, m_rows_pad):
    """coords [B,N,2], labels [B,N] -> [m_rows_pad, 8*G] f32 slab.
    Per point: (x, y, 1, onehot(-1), onehot(1), onehot(2), onehot(3), 0)."""
    B, N, _ = coords.shape
    M = B * N
    c = coords.reshape(M, 2).astype(jnp.float32)
    lab = labels.reshape(M).astype(jnp.int32)       # exact integer compares
    onehot = jnp.stack(
        [lab == -1, lab == 1, lab == 2, lab == 3], axis=-1).astype(jnp.float32)
    per_pt = jnp.concatenate(
        [c,
         jnp.ones((M, 1), jnp.float32),             # bias column
         onehot,
         jnp.zeros((M, 1), jnp.float32)], axis=-1)  # [M, 8]
    per_pt = jnp.pad(per_pt, ((0, m_rows_pad * G - M), (0, 0)))
    return per_pt.reshape(m_rows_pad, 8 * G)


def _pack_params(gauss, emb_table, input_image_size, G, lane_per_point):
    """Fold coordinate normalisation into the projection weights, phase-fold the
    cos half, and tile everything block-diagonally for G points per row.
    Returns [16*G, G*lane_per_point] = concat([W_proj, W_sel], axis=0)."""
    H, W = input_image_size
    D = emb_table.shape[1]
    two_pi = 2.0 * np.pi
    g0 = gauss[0].astype(jnp.float32)               # [D/2]
    g1 = gauss[1].astype(jnp.float32)
    # normalized = 2*((coord + 0.5)/size) - 1 ; proj = 2*pi*(nx*g0 + ny*g1)
    #            = x*(4*pi/W)*g0 + y*(4*pi/H)*g1
    #              + 2*pi*((1/W - 1)*g0 + (1/H - 1)*g1)
    a0 = (2.0 * two_pi / W) * g0
    a1 = (2.0 * two_pi / H) * g1
    bias = two_pi * ((1.0 / W - 1.0) * g0 + (1.0 / H - 1.0) * g1)

    # Phase fold: lanes [0, D/2) -> sin(theta), lanes [D/2, D) -> cos(theta)
    # = sin(theta + pi/2).
    a0d = jnp.concatenate([a0, a0])
    a1d = jnp.concatenate([a1, a1])
    biasd = jnp.concatenate([bias, bias + np.float32(np.pi / 2.0)])

    zD = jnp.zeros((D,), jnp.float32)
    emb = emb_table.astype(jnp.float32)
    # Row order matches the per-point value order (x, y, 1, oh-1, oh1, oh2, oh3, 0).
    wp_blk = jnp.stack([a0d, a1d, biasd, zD, zD, zD, zD, zD], axis=0)   # [8, D]
    ws_blk = jnp.stack([zD, zD, zD, emb[0], emb[1], emb[2], emb[3], zD],
                       axis=0)                                          # [8, D]

    pad = lane_per_point - D
    wp_blk = jnp.pad(wp_blk, ((0, 0), (0, pad)))
    ws_blk = jnp.pad(ws_blk, ((0, 0), (0, pad)))

    eye = jnp.eye(G, dtype=jnp.float32)
    wp = jnp.kron(eye, wp_blk)       # [8G, G*lane_per_point] block-diagonal
    ws = jnp.kron(eye, ws_blk)
    return jnp.concatenate([wp, ws], axis=0)        # [16G, d_out]


# --------------------------------------------------------------------------- #
# Forward wrapper
# --------------------------------------------------------------------------- #
def prompt_encoder_forward(coords, labels, gauss, emb_table, input_image_size,
                           *, tm_max=1024):
    """coords: [B, N, 2] float, labels: [B, N] int -> sparse embeddings [B, N, D]."""
    B, N, _ = coords.shape
    D = emb_table.shape[1]
    M = B * N

    # Group packing: G points per 128-lane output row (G = 4 for D = 32).
    if D <= 128 and 128 % D == 0:
        G = 128 // D
        lane_per_point = D
    else:
        G = 1
        lane_per_point = _round_up(D, 128)
    d_out = G * lane_per_point                      # multiple of 128
    K = 8 * G                                       # per-row contraction dim

    m_rows = (M + G - 1) // G
    tm = min(tm_max, _round_up(m_rows, 8))
    m_rows_pad = _round_up(m_rows, tm)
    grid_n = m_rows_pad // tm
    # v7x has two TensorCores: prefer >= 2 grid steps when there's enough work.
    if grid_n == 1 and m_rows > 256:
        tm = _round_up((m_rows + 1) // 2, 8)
        m_rows_pad = _round_up(m_rows, tm)
        grid_n = m_rows_pad // tm

    pts = _pack_points(coords, labels, G, m_rows_pad)           # [m_rows_pad, K]
    params = _pack_params(gauss, emb_table, input_image_size,
                          G, lane_per_point)                    # [2K, d_out]

    kernel = functools.partial(prompt_encoder_kernel, k=K)

    cost = pl.CostEstimate(
        flops=2 * 2 * m_rows_pad * K * d_out + m_rows_pad * d_out,
        transcendentals=m_rows_pad * d_out,                     # single sin
        bytes_accessed=(m_rows_pad * _round_up(K, 128) * 4      # pts (tiled-layout pad)
                        + 2 * K * d_out * 4                     # params
                        + m_rows_pad * d_out * 4),              # out
    )

    out = pl.pallas_call(
        kernel,
        grid=(grid_n,),
        out_shape=jax.ShapeDtypeStruct((m_rows_pad, d_out), jnp.float32),
        in_specs=[
            pl.BlockSpec((tm, K), lambda i: (i, 0)),
            pl.BlockSpec((2 * K, d_out), lambda i: (0, 0)),
        ],
        out_specs=pl.BlockSpec((tm, d_out), lambda i: (i, 0)),
        compiler_params=pltpu.CompilerParams(
            dimension_semantics=("parallel",)),
        cost_estimate=cost,
    )(pts, params)

    # Unpack groups: row r holds points r*G .. r*G+G-1, each in its own
    # lane_per_point-wide lane block.  Padded rows are exactly zero.
    out = out.reshape(m_rows_pad * G, lane_per_point)[:M, :D]
    return out.reshape(B, N, D)


# --------------------------------------------------------------------------- #
# Pure-JAX reference (mirrors the given PyTorch module exactly)
# --------------------------------------------------------------------------- #
def reference_forward(coords, labels, gauss, emb_table, input_image_size):
    H, W = input_image_size
    c = coords.astype(jnp.float32) + 0.5
    c = c.at[:, :, 0].set(c[:, :, 0] / W)
    c = c.at[:, :, 1].set(c[:, :, 1] / H)
    c = 2.0 * c - 1.0
    proj = 2.0 * np.pi * (c @ gauss)                          # [B, N, D/2]
    pe = jnp.concatenate([jnp.sin(proj), jnp.cos(proj)], -1)  # [B, N, D]
    lab = labels[:, :, None]
    # NOTE: as in the given module, PE is kept (not zeroed) for label == -1.
    pe = pe + (lab == -1).astype(jnp.float32) * emb_table[0][None, None, :]
    pe = pe + (lab == 1).astype(jnp.float32) * emb_table[1][None, None, :]
    pe = pe + (lab == 2).astype(jnp.float32) * emb_table[2][None, None, :]
    pe = pe + (lab == 3).astype(jnp.float32) * emb_table[3][None, None, :]
    return pe


if __name__ == "__main__":
    # Module configuration (small, consistent with PromptEncoder.__init__)
    embed_dim = 32
    num_pos_feats = embed_dim // 2
    input_image_size = (64, 64)
    image_embedding_size = (8, 8)   # only used by get_dense_pe (not in forward)

    key = jax.random.PRNGKey(0)
    (k_gauss, k_inv, k_pt, k_tl, k_br,
     k_coords, k_labels, k_coords2, k_labels2) = jax.random.split(key, 9)

    # Deterministic "parameters" (randn buffer / nn.Embedding weights).
    gauss = jax.random.normal(k_gauss, (2, num_pos_feats), dtype=jnp.float32)
    emb_table = jnp.stack([
        jax.random.normal(k_inv, (embed_dim,), dtype=jnp.float32),  # invalid_points
        jax.random.normal(k_pt, (embed_dim,), dtype=jnp.float32),   # point_embeddings
        jax.random.normal(k_tl, (embed_dim,), dtype=jnp.float32),   # bbox_top_left
        jax.random.normal(k_br, (embed_dim,), dtype=jnp.float32),   # bbox_bottom_right
    ], axis=0)                                                      # [4, D]

    label_choices = jnp.array([-1, 0, 1, 2, 3], dtype=jnp.int32)

    # --- small case (module default-ish shapes): B=2, N=8 -------------------
    B, N = 2, 8
    coords = jax.random.uniform(
        k_coords, (B, N, 2), dtype=jnp.float32, minval=0.0, maxval=64.0)
    labels = jax.random.choice(k_labels, label_choices, shape=(B, N))

    out = prompt_encoder_forward(coords, labels, gauss, emb_table, input_image_size)
    out = jax.block_until_ready(out)
    ref = reference_forward(coords, labels, gauss, emb_table, input_image_size)
    np.testing.assert_allclose(np.asarray(out), np.asarray(ref), atol=1e-4, rtol=1e-4)

    # --- larger case: exercises >1 grid step / group packing ----------------
    B2, N2 = 4, 1024
    coords2 = jax.random.uniform(
        k_coords2, (B2, N2, 2), dtype=jnp.float32, minval=0.0, maxval=64.0)
    labels2 = jax.random.choice(k_labels2, label_choices, shape=(B2, N2))

    out2 = prompt_encoder_forward(coords2, labels2, gauss, emb_table, input_image_size)
    out2 = jax.block_until_ready(out2)
    ref2 = reference_forward(coords2, labels2, gauss, emb_table, input_image_size)
    np.testing.assert_allclose(np.asarray(out2), np.asarray(ref2), atol=1e-4, rtol=1e-4)

    print("KERNEL_OK")
</pallas_src>

<mosaic_0001>
module attributes {stable_mosaic.version = 11 : i64} {
  func.func @prompt_encoder_kernel(%arg0: i32, %arg1: memref<8x32xf32, #tpu.memory_space<vmem>>, %arg2: memref<64x128xf32, #tpu.memory_space<vmem>>, %arg3: memref<8x128xf32, #tpu.memory_space<vmem>>) attributes {dimension_semantics = [#tpu.dimension_semantics<parallel>], iteration_bounds = array<i64: 1>, scalar_prefetch = 0 : i64, scratch_operands = 0 : i64, tpu.core_type = #tpu.core_type<tc>, window_params = [{transform_indices = @transform_0, window_bounds = array<i64: 8, 32>}, {pipeline_mode = #tpu.pipeline_mode<synchronous>, transform_indices = @transform_1, window_bounds = array<i64: 64, 128>}, {transform_indices = @transform_2, window_bounds = array<i64: 8, 128>}]} {
    %c0 = arith.constant 0 : index
    %c0_0 = arith.constant 0 : index
    %0 = vector.load %arg1[%c0, %c0_0] : memref<8x32xf32, #tpu.memory_space<vmem>>, vector<8x32xf32>
    %c0_1 = arith.constant 0 : index
    %c0_2 = arith.constant 0 : index
    %1 = vector.load %arg2[%c0_1, %c0_2] : memref<64x128xf32, #tpu.memory_space<vmem>>, vector<32x128xf32>
    %c32 = arith.constant 32 : index
    %c0_3 = arith.constant 0 : index
    %2 = vector.load %arg2[%c32, %c0_3] : memref<64x128xf32, #tpu.memory_space<vmem>>, vector<32x128xf32>
    %cst = arith.constant dense<0.000000e+00> : vector<8x128xf32>
    %3 = tpu.matmul %0, %1, %cst {dimension_numbers = #tpu.dot_dimension_numbers<[1], [0], [0], [1], [0, 0, 1, 1], [], []>, precision = #tpu.contract_precision<fp32>} : vector<8x32xf32>, vector<32x128xf32>, vector<8x128xf32> -> vector<8x128xf32>
    %cst_4 = arith.constant dense<0.000000e+00> : vector<8x128xf32>
    %4 = tpu.matmul %0, %2, %cst_4 {dimension_numbers = #tpu.dot_dimension_numbers<[1], [0], [0], [1], [0, 0, 1, 1], [], []>, precision = #tpu.contract_precision<fp32>} : vector<8x32xf32>, vector<32x128xf32>, vector<8x128xf32> -> vector<8x128xf32>
    %5 = math.sin %3 : vector<8x128xf32>
    %6 = arith.addf %5, %4 : vector<8x128xf32>
    %c0_5 = arith.constant 0 : index
    %c0_6 = arith.constant 0 : index
    %7 = vector.load %arg3[%c0_5, %c0_6] : memref<8x128xf32, #tpu.memory_space<vmem>>, vector<8x128xf32>
    tpu.vector_store %arg3[%c0_5, %c0_6], %6 {strides = array<i32>} : memref<8x128xf32, #tpu.memory_space<vmem>>, vector<8x128xf32>,
    return
  }
  func.func @transform_0(%arg0: i32) -> (i32, i32) {
    %c0_i32 = arith.constant 0 : i32
    %c0_i32_0 = arith.constant 0 : i32
    return %arg0, %c0_i32 : i32, i32
  }
  func.func @transform_1(%arg0: i32) -> (i32, i32) {
    %c0_i32 = arith.constant 0 : i32
    %c0_i32_0 = arith.constant 0 : i32
    %c0_i32_1 = arith.constant 0 : i32
    return %c0_i32, %c0_i32_0 : i32, i32
  }
  func.func @transform_2(%arg0: i32) -> (i32, i32) {
    %c0_i32 = arith.constant 0 : i32
    %c0_i32_0 = arith.constant 0 : i32
    return %arg0, %c0_i32 : i32, i32
  }
}

</mosaic_0001>

<llo_original>
// kernel: tpu_custom_call.1
$region0: #{tpu_custom_call.1}
  #allocation0 [shape = 'u32[]', space=smem, size = 0x4, offset = 0x4, fixed_abs, tag = 'smem constant byte address 0x4 - core index']
  #allocation1 [shape = 'u32[72,128]{1,0:T(1,128)}', space=vmem, size = 0x9000, scoped, tag = 'internal scratch']
  %s0 = inlined_call_operand.hbm [shape: f32[8,32], index: 0, kind: input, shape index: {}]
  %s1 = inlined_call_operand.hbm [shape: f32[64,128], index: 1, kind: input, shape index: {}]
  %s2 = inlined_call_operand.hbm [shape: f32[8,128], index: 2, kind: output, shape index: {}]
  %s3 = sld [smem:[#allocation0]]
  $region26: #{tpu_custom_call.1} parent=0
    _
  %s5 = ssub.s32 1, %s3
  %s6 = scalar_select 0, %s5, %s3
  $region1: #{tpu_custom_call.1} parent=0
    #allocation2 [shape = 'u8[4096]{0}', space=vmem, size = 0x1000, scoped, tag = 'input window, operand 0, single buffered']
    #allocation3 [shape = 's32[1]{0}', space=sflag, size = 0x4, scoped, tag = 'scoped memory for tpu_custom_call.1']
    #allocation4 [shape = 's32[1]{0}', space=sflag, size = 0x4, scoped, tag = 'scoped memory for tpu_custom_call.1']
    #allocation5 [shape = 'u8[32768]{0}', space=vmem, size = 0x8000, scoped, tag = 'input window, operand 1, single buffered']
    #allocation6 [shape = 's32[1]{0}', space=sflag, size = 0x4, scoped, tag = 'scoped memory for tpu_custom_call.1']
    #allocation7 [shape = 'u8[4096]{0}', space=vmem, size = 0x1000, scoped, tag = 'output window, operand 0, single buffered']
    %7 = vsyncpa [#allocation3], 0
    %8 = vsyncpa [#allocation6], 0
    %9 = vsyncpa [#allocation4], 0
    // Predicated region
    $region2: #{tpu_custom_call.1} parent=1 // pred_check
      _
    $region3: #{tpu_custom_call.1} parent=1 // pred_check_branch
      %11 = sbr.rel (0) target = $region5
    $region4: #{tpu_custom_call.1} parent=1 // pred_region
      %13 = vsyncadd [#allocation3], 0
      %s15 = sshll.u32 %s0, 4
      %s16 = int_to_ptr.hbm [resolvable:$true] %s15
      %s17 = sshll.u32 [#allocation2], 4
      %s18 = int_to_ptr.vmem [resolvable:$true] %s17
      %20 = dma.hbm_to_vmem [thread:$0]  %s16, 128, %s18, [#allocation3]
    $region5: #{tpu_custom_call.1} parent=1 // pred_fallthru
      _
    // Predicated region
    $region6: #{tpu_custom_call.1} parent=1 // pred_check
      _
    $region7: #{tpu_custom_call.1} parent=1 // pred_check_branch
      %22 = sbr.rel (0) target = $region9
    $region8: #{tpu_custom_call.1} parent=1 // pred_region
      %24 = vsyncadd [#allocation6], 0
      %s25 = sshll.u32 %s1, 4
      %s26 = int_to_ptr.hbm [resolvable:$true] %s25
      %s27 = sshll.u32 [#allocation5], 4
      %s28 = int_to_ptr.vmem [resolvable:$true] %s27
      %33 = dma.hbm_to_vmem [thread:$0]  %s26, 1024, %s28, [#allocation6], 128, 128, 8
    $region9: #{tpu_custom_call.1} parent=1 // pred_fallthru
      _
    // Predicated region
    $region10: #{tpu_custom_call.1} parent=1 // pred_check
      _
    $region11: #{tpu_custom_call.1} parent=1 // pred_check_branch
      %35 = sbr.rel (0) target = $region13
    $region12: #{tpu_custom_call.1} parent=1 // pred_region
      %37 = dma.done [#allocation3], 128
    $region13: #{tpu_custom_call.1} parent=1 // pred_fallthru
      _
    // Predicated region
    $region14: #{tpu_custom_call.1} parent=1 // pred_check
      _
    $region15: #{tpu_custom_call.1} parent=1 // pred_check_branch
      %39 = sbr.rel (0) target = $region17
    $region16: #{tpu_custom_call.1} parent=1 // pred_region
      %41 = dma.done [#allocation6], 1024
    $region17: #{tpu_custom_call.1} parent=1 // pred_fallthru
      _
    %v42 = vld [vmem:[#allocation2] sm:$0xff]
    %v43 = vld [vmem:[#allocation5] sm:$0xff]
    %v44 = vld [vmem:[#allocation5 + $0x8] sm:$0xff]
    %v45 = vld [vmem:[#allocation5 + $0x10] sm:$0xff]
    %v46 = vld [vmem:[#allocation5 + $0x18] sm:$0xff]
    %v47 = vld [vmem:[#allocation5 + $0x20] sm:$0xff]
    %v48 = vld [vmem:[#allocation5 + $0x28] sm:$0xff]
    %v49 = vld [vmem:[#allocation5 + $0x30] sm:$0xff]
    %v50 = vld [vmem:[#allocation5 + $0x38] sm:$0xff]
    %vm51 = vcmask 261120
    %v53 = vsel %vm51, %v42, 0
    %55 = vmatpush.msra.mxu0 0.0
    %56 = vmatpush.msra.mxu0 0.0
    %57 = vmatpush.msra.mxu0 0.0
    %58 = vmatpush.msra.mxu0 0.0
    %59 = vmatpush.msra.mxu0 0.0
    %60 = vmatpush.msra.mxu0 0.0
    %61 = vmatpush.msra.mxu0 0.0
    %62 = vmatpush.msra.mxu0 0.0
    %63 = vmatpush.msra.mxu0 0.0
    %64 = vmatpush.msra.mxu0 0.0
    %65 = vmatpush.msra.mxu0 0.0
    %66 = vmatpush.msra.mxu0 0.0
    %v67 = vand.u32 %v46, 4294901760
    %68 = vmatpush.msra.mxu0 %v67
    %v69 = vand.u32 %v45, 4294901760
    %70 = vmatpush.msra.mxu0 %v69
    %v71 = vand.u32 %v44, 4294901760
    %72 = vmatpush.msra.mxu0 %v71
    %v73 = vand.u32 %v43, 4294901760
    %74 = vmatpush.msra.mxu0 %v73
    %v75 = vand.u32 %v53, 4294901760
    %v76 = vsub.f32 %v53, %v75
    %v77 = vand.u32 %v76, 4294901760
    %v78 = vsub.f32 %v76, %v77
    %v79 = vand.u32 %v78, 4294901760
    %80 = vmatmul.f32.gmra.mxu0 %v79
    %v81 = vpop.f32.mrf.mxu0
    %v82 = vadd.f32 0.0, %v81
    %83 = vdwg.mxu0
    %84 = vmatpush.msra.mxu0 0.0
    %85 = vmatpush.msra.mxu0 0.0
    %86 = vmatpush.msra.mxu0 0.0
    %87 = vmatpush.msra.mxu0 0.0
    %88 = vmatpush.msra.mxu0 0.0
    %89 = vmatpush.msra.mxu0 0.0
    %90 = vmatpush.msra.mxu0 0.0
    %91 = vmatpush.msra.mxu0 0.0
    %92 = vmatpush.msra.mxu0 0.0
    %93 = vmatpush.msra.mxu0 0.0
    %94 = vmatpush.msra.mxu0 0.0
    %95 = vmatpush.msra.mxu0 0.0
    %v96 = vand.u32 %v46, 4294901760
    %v97 = vsub.f32 %v46, %v96
    %v98 = vand.u32 %v97, 4294901760
    %v99 = vsub.f32 %v97, %v98
    %v100 = vand.u32 %v99, 4294901760
    %101 = vmatpush.msra.mxu0 %v100
    %v102 = vand.u32 %v45, 4294901760
    %v103 = vsub.f32 %v45, %v102
    %v104 = vand.u32 %v103, 4294901760
    %v105 = vsub.f32 %v103, %v104
    %v106 = vand.u32 %v105, 4294901760
    %107 = vmatpush.msra.mxu0 %v106
    %v108 = vand.u32 %v44, 4294901760
    %v109 = vsub.f32 %v44, %v108
    %v110 = vand.u32 %v109, 4294901760
    %v111 = vsub.f32 %v109, %v110
    %v112 = vand.u32 %v111, 4294901760
    %113 = vmatpush.msra.mxu0 %v112
    %v114 = vand.u32 %v43, 4294901760
    %v115 = vsub.f32 %v43, %v114
    %v116 = vand.u32 %v115, 4294901760
    %v117 = vsub.f32 %v115, %v116
    %v118 = vand.u32 %v117, 4294901760
    %119 = vmatpush.msra.mxu0 %v118
    %v120 = vand.u32 %v53, 4294901760
    %121 = vmatmul.f32.gmra.mxu0 %v120
    %v122 = vpop.f32.mrf.mxu0
    %v123 = vadd.f32 %v82, %v122
    %124 = vdwg.mxu0
    %125 = vmatpush.msra.mxu0 0.0
    %126 = vmatpush.msra.mxu0 0.0
    %127 = vmatpush.msra.mxu0 0.0
    %128 = vmatpush.msra.mxu0 0.0
    %129 = vmatpush.msra.mxu0 0.0
    %130 = vmatpush.msra.mxu0 0.0
    %131 = vmatpush.msra.mxu0 0.0
    %132 = vmatpush.msra.mxu0 0.0
    %133 = vmatpush.msra.mxu0 0.0
    %134 = vmatpush.msra.mxu0 0.0
    %135 = vmatpush.msra.mxu0 0.0
    %136 = vmatpush.msra.mxu0 0.0
    %v137 = vand.u32 %v46, 4294901760
    %v138 = vsub.f32 %v46, %v137
    %139 = vmatpush.msra.mxu0 %v138
    %v140 = vand.u32 %v45, 4294901760
    %v141 = vsub.f32 %v45, %v140
    %142 = vmatpush.msra.mxu0 %v141
    %v143 = vand.u32 %v44, 4294901760
    %v144 = vsub.f32 %v44, %v143
    %145 = vmatpush.msra.mxu0 %v144
    %v146 = vand.u32 %v43, 4294901760
    %v147 = vsub.f32 %v43, %v146
    %148 = vmatpush.msra.mxu0 %v147
    %v149 = vand.u32 %v53, 4294901760
    %v150 = vsub.f32 %v53, %v149
    %151 = vmatmul.f32.gmra.mxu0 %v150
    %v152 = vpop.f32.mrf.mxu0
    %v153 = vadd.f32 %v123, %v152
    %154 = vdwg.mxu0
    %155 = vmatpush.msra.mxu0 0.0
    %156 = vmatpush.msra.mxu0 0.0
    %157 = vmatpush.msra.mxu0 0.0
    %158 = vmatpush.msra.mxu0 0.0
    %159 = vmatpush.msra.mxu0 0.0
    %160 = vmatpush.msra.mxu0 0.0
    %161 = vmatpush.msra.mxu0 0.0
    %162 = vmatpush.msra.mxu0 0.0
    %163 = vmatpush.msra.mxu0 0.0
    %164 = vmatpush.msra.mxu0 0.0
    %165 = vmatpush.msra.mxu0 0.0
    %166 = vmatpush.msra.mxu0 0.0
    %v167 = vand.u32 %v46, 4294901760
    %168 = vmatpush.msra.mxu0 %v167
    %v169 = vand.u32 %v45, 4294901760
    %170 = vmatpush.msra.mxu0 %v169
    %v171 = vand.u32 %v44, 4294901760
    %172 = vmatpush.msra.mxu0 %v171
    %v173 = vand.u32 %v43, 4294901760
    %174 = vmatpush.msra.mxu0 %v173
    %v175 = vand.u32 %v53, 4294901760
    %v176 = vsub.f32 %v53, %v175
    %v177 = vand.u32 %v176, 4294901760
    %178 = vmatmul.f32.gmra.mxu0 %v177
    %v179 = vpop.f32.mrf.mxu0
    %v180 = vadd.f32 %v153, %v179
    %181 = vdwg.mxu0
    %182 = vmatpush.msra.mxu0 0.0
    %183 = vmatpush.msra.mxu0 0.0
    %184 = vmatpush.msra.mxu0 0.0
    %185 = vmatpush.msra.mxu0 0.0
    %186 = vmatpush.msra.mxu0 0.0
    %187 = vmatpush.msra.mxu0 0.0
    %188 = vmatpush.msra.mxu0 0.0
    %189 = vmatpush.msra.mxu0 0.0
    %190 = vmatpush.msra.mxu0 0.0
    %191 = vmatpush.msra.mxu0 0.0
    %192 = vmatpush.msra.mxu0 0.0
    %193 = vmatpush.msra.mxu0 0.0
    %v194 = vand.u32 %v46, 4294901760
    %v195 = vsub.f32 %v46, %v194
    %v196 = vand.u32 %v195, 4294901760
    %197 = vmatpush.msra.mxu0 %v196
    %v198 = vand.u32 %v45, 4294901760
    %v199 = vsub.f32 %v45, %v198
    %v200 = vand.u32 %v199, 4294901760
    %201 = vmatpush.msra.mxu0 %v200
    %v202 = vand.u32 %v44, 4294901760
    %v203 = vsub.f32 %v44, %v202
    %v204 = vand.u32 %v203, 4294901760
    %205 = vmatpush.msra.mxu0 %v204
    %v206 = vand.u32 %v43, 4294901760
    %v207 = vsub.f32 %v43, %v206
    %v208 = vand.u32 %v207, 4294901760
    %209 = vmatpush.msra.mxu0 %v208
    %v210 = vand.u32 %v53, 4294901760
    %211 = vmatmul.f32.gmra.mxu0 %v210
    %v212 = vpop.f32.mrf.mxu0
    %v213 = vadd.f32 %v180, %v212
    %214 = vdwg.mxu0
    %215 = vmatpush.msra.mxu0 0.0
    %216 = vmatpush.msra.mxu0 0.0
    %217 = vmatpush.msra.mxu0 0.0
    %218 = vmatpush.msra.mxu0 0.0
    %219 = vmatpush.msra.mxu0 0.0
    %220 = vmatpush.msra.mxu0 0.0
    %221 = vmatpush.msra.mxu0 0.0
    %222 = vmatpush.msra.mxu0 0.0
    %223 = vmatpush.msra.mxu0 0.0
    %224 = vmatpush.msra.mxu0 0.0
    %225 = vmatpush.msra.mxu0 0.0
    %226 = vmatpush.msra.mxu0 0.0
    %v227 = vand.u32 %v46, 4294901760
    %228 = vmatpush.msra.mxu0 %v227
    %v229 = vand.u32 %v45, 4294901760
    %230 = vmatpush.msra.mxu0 %v229
    %v231 = vand.u32 %v44, 4294901760
    %232 = vmatpush.msra.mxu0 %v231
    %v233 = vand.u32 %v43, 4294901760
    %234 = vmatpush.msra.mxu0 %v233
    %v235 = vand.u32 %v53, 4294901760
    %236 = vmatmul.f32.gmra.mxu0 %v235
    %v237 = vpop.f32.mrf.mxu0
    %v238 = vadd.f32 %v213, %v237
    %239 = vdwg.mxu0
    %240 = vmatpush.msra.mxu0 0.0
    %241 = vmatpush.msra.mxu0 0.0
    %242 = vmatpush.msra.mxu0 0.0
    %243 = vmatpush.msra.mxu0 0.0
    %244 = vmatpush.msra.mxu0 0.0
    %245 = vmatpush.msra.mxu0 0.0
    %246 = vmatpush.msra.mxu0 0.0
    %247 = vmatpush.msra.mxu0 0.0
    %248 = vmatpush.msra.mxu0 0.0
    %249 = vmatpush.msra.mxu0 0.0
    %250 = vmatpush.msra.mxu0 0.0
    %251 = vmatpush.msra.mxu0 0.0
    %v252 = vand.u32 %v50, 4294901760
    %253 = vmatpush.msra.mxu0 %v252
    %v254 = vand.u32 %v49, 4294901760
    %255 = vmatpush.msra.mxu0 %v254
    %v256 = vand.u32 %v48, 4294901760
    %257 = vmatpush.msra.mxu0 %v256
    %v258 = vand.u32 %v47, 4294901760
    %259 = vmatpush.msra.mxu0 %v258
    %v260 = vand.u32 %v53, 4294901760
    %v261 = vsub.f32 %v53, %v260
    %v262 = vand.u32 %v261, 4294901760
    %v263 = vsub.f32 %v261, %v262
    %v264 = vand.u32 %v263, 4294901760
    %265 = vmatmul.f32.gmra.mxu0 %v264
    %v266 = vpop.f32.mrf.mxu0
    %v267 = vadd.f32 0.0, %v266
    %268 = vdwg.mxu0
    %269 = vmatpush.msra.mxu0 0.0
    %270 = vmatpush.msra.mxu0 0.0
    %271 = vmatpush.msra.mxu0 0.0
    %272 = vmatpush.msra.mxu0 0.0
    %273 = vmatpush.msra.mxu0 0.0
    %274 = vmatpush.msra.mxu0 0.0
    %275 = vmatpush.msra.mxu0 0.0
    %276 = vmatpush.msra.mxu0 0.0
    %277 = vmatpush.msra.mxu0 0.0
    %278 = vmatpush.msra.mxu0 0.0
    %279 = vmatpush.msra.mxu0 0.0
    %280 = vmatpush.msra.mxu0 0.0
    %v281 = vand.u32 %v50, 4294901760
    %v282 = vsub.f32 %v50, %v281
    %v283 = vand.u32 %v282, 4294901760
    %v284 = vsub.f32 %v282, %v283
    %v285 = vand.u32 %v284, 4294901760
    %286 = vmatpush.msra.mxu0 %v285
    %v287 = vand.u32 %v49, 4294901760
    %v288 = vsub.f32 %v49, %v287
    %v289 = vand.u32 %v288, 4294901760
    %v290 = vsub.f32 %v288, %v289
    %v291 = vand.u32 %v290, 4294901760
    %292 = vmatpush.msra.mxu0 %v291
    %v293 = vand.u32 %v48, 4294901760
    %v294 = vsub.f32 %v48, %v293
    %v295 = vand.u32 %v294, 4294901760
    %v296 = vsub.f32 %v294, %v295
    %v297 = vand.u32 %v296, 4294901760
    %298 = vmatpush.msra.mxu0 %v297
    %v299 = vand.u32 %v47, 4294901760
    %v300 = vsub.f32 %v47, %v299
    %v301 = vand.u32 %v300, 4294901760
    %v302 = vsub.f32 %v300, %v301
    %v303 = vand.u32 %v302, 4294901760
    %304 = vmatpush.msra.mxu0 %v303
    %v305 = vand.u32 %v53, 4294901760
    %306 = vmatmul.f32.gmra.mxu0 %v305
    %v307 = vpop.f32.mrf.mxu0
    %v308 = vadd.f32 %v267, %v307
    %309 = vdwg.mxu0
    %310 = vmatpush.msra.mxu0 0.0
    %311 = vmatpush.msra.mxu0 0.0
    %312 = vmatpush.msra.mxu0 0.0
    %313 = vmatpush.msra.mxu0 0.0
    %314 = vmatpush.msra.mxu0 0.0
    %315 = vmatpush.msra.mxu0 0.0
    %316 = vmatpush.msra.mxu0 0.0
    %317 = vmatpush.msra.mxu0 0.0
    %318 = vmatpush.msra.mxu0 0.0
    %319 = vmatpush.msra.mxu0 0.0
    %320 = vmatpush.msra.mxu0 0.0
    %321 = vmatpush.msra.mxu0 0.0
    %v322 = vand.u32 %v50, 4294901760
    %v323 = vsub.f32 %v50, %v322
    %324 = vmatpush.msra.mxu0 %v323
    %v325 = vand.u32 %v49, 4294901760
    %v326 = vsub.f32 %v49, %v325
    %327 = vmatpush.msra.mxu0 %v326
    %v328 = vand.u32 %v48, 4294901760
    %v329 = vsub.f32 %v48, %v328
    %330 = vmatpush.msra.mxu0 %v329
    %v331 = vand.u32 %v47, 4294901760
    %v332 = vsub.f32 %v47, %v331
    %333 = vmatpush.msra.mxu0 %v332
    %v334 = vand.u32 %v53, 4294901760
    %v335 = vsub.f32 %v53, %v334
    %336 = vmatmul.f32.gmra.mxu0 %v335
    %v337 = vpop.f32.mrf.mxu0
    %v338 = vadd.f32 %v308, %v337
    %339 = vdwg.mxu0
    %340 = vmatpush.msra.mxu0 0.0
    %341 = vmatpush.msra.mxu0 0.0
    %342 = vmatpush.msra.mxu0 0.0
    %343 = vmatpush.msra.mxu0 0.0
    %344 = vmatpush.msra.mxu0 0.0
    %345 = vmatpush.msra.mxu0 0.0
    %346 = vmatpush.msra.mxu0 0.0
    %347 = vmatpush.msra.mxu0 0.0
    %348 = vmatpush.msra.mxu0 0.0
    %349 = vmatpush.msra.mxu0 0.0
    %350 = vmatpush.msra.mxu0 0.0
    %351 = vmatpush.msra.mxu0 0.0
    %v352 = vand.u32 %v50, 4294901760
    %353 = vmatpush.msra.mxu0 %v352
    %v354 = vand.u32 %v49, 4294901760
    %355 = vmatpush.msra.mxu0 %v354
    %v356 = vand.u32 %v48, 4294901760
    %357 = vmatpush.msra.mxu0 %v356
    %v358 = vand.u32 %v47, 4294901760
    %359 = vmatpush.msra.mxu0 %v358
    %v360 = vand.u32 %v53, 4294901760
    %v361 = vsub.f32 %v53, %v360
    %v362 = vand.u32 %v361, 4294901760
    %363 = vmatmul.f32.gmra.mxu0 %v362
    %v364 = vpop.f32.mrf.mxu0
    %v365 = vadd.f32 %v338, %v364
    %366 = vdwg.mxu0
    %367 = vmatpush.msra.mxu0 0.0
    %368 = vmatpush.msra.mxu0 0.0
    %369 = vmatpush.msra.mxu0 0.0
    %370 = vmatpush.msra.mxu0 0.0
    %371 = vmatpush.msra.mxu0 0.0
    %372 = vmatpush.msra.mxu0 0.0
    %373 = vmatpush.msra.mxu0 0.0
    %374 = vmatpush.msra.mxu0 0.0
    %375 = vmatpush.msra.mxu0 0.0
    %376 = vmatpush.msra.mxu0 0.0
    %377 = vmatpush.msra.mxu0 0.0
    %378 = vmatpush.msra.mxu0 0.0
    %v379 = vand.u32 %v50, 4294901760
    %v380 = vsub.f32 %v50, %v379
    %v381 = vand.u32 %v380, 4294901760
    %382 = vmatpush.msra.mxu0 %v381
    %v383 = vand.u32 %v49, 4294901760
    %v384 = vsub.f32 %v49, %v383
    %v385 = vand.u32 %v384, 4294901760
    %386 = vmatpush.msra.mxu0 %v385
    %v387 = vand.u32 %v48, 4294901760
    %v388 = vsub.f32 %v48, %v387
    %v389 = vand.u32 %v388, 4294901760
    %390 = vmatpush.msra.mxu0 %v389
    %v391 = vand.u32 %v47, 4294901760
    %v392 = vsub.f32 %v47, %v391
    %v393 = vand.u32 %v392, 4294901760
    %394 = vmatpush.msra.mxu0 %v393
    %v395 = vand.u32 %v53, 4294901760
    %396 = vmatmul.f32.gmra.mxu0 %v395
    %v397 = vpop.f32.mrf.mxu0
    %v398 = vadd.f32 %v365, %v397
    %399 = vdwg.mxu0
    %400 = vmatpush.msra.mxu0 0.0
    %401 = vmatpush.msra.mxu0 0.0
    %402 = vmatpush.msra.mxu0 0.0
    %403 = vmatpush.msra.mxu0 0.0
    %404 = vmatpush.msra.mxu0 0.0
    %405 = vmatpush.msra.mxu0 0.0
    %406 = vmatpush.msra.mxu0 0.0
    %407 = vmatpush.msra.mxu0 0.0
    %408 = vmatpush.msra.mxu0 0.0
    %409 = vmatpush.msra.mxu0 0.0
    %410 = vmatpush.msra.mxu0 0.0
    %411 = vmatpush.msra.mxu0 0.0
    %v412 = vand.u32 %v50, 4294901760
    %413 = vmatpush.msra.mxu0 %v412
    %v414 = vand.u32 %v49, 4294901760
    %415 = vmatpush.msra.mxu0 %v414
    %v416 = vand.u32 %v48, 4294901760
    %417 = vmatpush.msra.mxu0 %v416
    %v418 = vand.u32 %v47, 4294901760
    %419 = vmatpush.msra.mxu0 %v418
    %v420 = vand.u32 %v53, 4294901760
    %421 = vmatmul.f32.gmra.mxu0 %v420
    %v422 = vpop.f32.mrf.mxu0
    %v423 = vadd.f32 %v398, %v422
    %424 = vdwg.mxu0
    %v425 = vand.u32 2147483647, %v238
    %vm426 = vcmp.le.f32.partialorder %v425, 0.7853982
    %vm427 = vcmp.lt.s32.totalorder %v238, 0
    %v428 = vand.u32 %v238, 2139095040
    %v429 = vshrl.u32 %v428, 23
    %v430 = vsub.s32 %v429, 127
    %v431 = vand.u32 2147483647, %v238
    %v432 = vand.u32 %v431, 8388607
    %v433 = vor.u32 %v432, 8388608
    %v434 = vsub.s32 0, %v433
    %v435 = vadd.s32 %v430, 1
    %vm436 = vcmp.gt.s32.totalorder %v435, 0
    %v437 = vsel %vm436, %v435, 0
    %v438 = vshrl.u32 %v437, 5
    %v439 = vand.u32 %v437, 31
    %v440 = vsub.s32 32, %v439
    %v441 = vshrl.u32 683565275, %v440
    %v442 = vshll.u32 683565275, %v439
    %v443 = vshrl.u32 2475754826, %v440
    %v444 = vor.u32 %v442, %v443
    %v445 = vshll.u32 2475754826, %v439
    %v446 = vshrl.u32 2131351028, %v440
    %v447 = vor.u32 %v445, %v446
    %v448 = vshll.u32 2131351028, %v439
    %v449 = vshrl.u32 2102212464, %v440
    %v450 = vor.u32 %v448, %v449
    %v451 = vshll.u32 2102212464, %v439
    %v452 = vshrl.u32 920167782, %v440
    %v453 = vor.u32 %v451, %v452
    %v454 = vshll.u32 920167782, %v439
    %v455 = vshrl.u32 1326507024, %v440
    %v456 = vor.u32 %v454, %v455
    %vm457 = vcmp.lt.s32.totalorder %v438, 1
    %vm458 = vcmp.lt.s32.totalorder %v438, 2
    %vm459 = vcmp.lt.s32.totalorder %v438, 3
    %vm460 = vcmp.lt.s32.totalorder %v438, 4
    %v461 = vsel %vm457, %v441, %v444
    %v462 = vsel %vm460, %v450, 2102212464
    %v463 = vsel %vm459, %v447, %v462
    %v464 = vsel %vm458, %v461, %v463
    %v465 = vsel %vm457, %v444, %v447
    %v466 = vsel %vm460, %v453, 920167782
    %v467 = vsel %vm459, %v450, %v466
    %v468 = vsel %vm458, %v465, %v467
    %v469 = vsel %vm457, %v447, %v450
    %v470 = vsel %vm460, %v456, 1326507024
    %v471 = vsel %vm459, %v453, %v470
    %v472 = vsel %vm458, %v469, %v471
    %v473 = vshll.u32 %v433, 8
    %v474 = vand.u32 %v473, 65535
    %v475 = vshrl.u32 %v473, 16
    %v476 = vand.u32 %v472, 65535
    %v477 = vshrl.u32 %v472, 16
    %v478 = vmul.u32 %v474, %v476
    %v479 = vmul.u32 %v474, %v477
    %v480 = vmul.u32 %v475, %v476
    %v481 = vmul.u32 %v475, %v477
    %v482 = vshll.u32 %v479, 16
    %v483 = vshrl.u32 %v479, 16
    %v484 = vshll.u32 %v480, 16
    %v485 = vshrl.u32 %v480, 16
    %vm486 = vc.u32 %v478, %v482
    %v487 = vsel %vm486, 1, 0
    %v488 = vadd.s32 %v478, %v482
    %v489 = vadd.s32 %v481, %v487
    %vm490 = vc.u32 %v488, %v484
    %v491 = vsel %vm490, 1, 0
    %v492 = vadd.s32 %v488, %v484
    %v493 = vadd.s32 %v489, %v491
    %v494 = vadd.s32 %v493, %v483
    %v495 = vadd.s32 %v494, %v485
    %v496 = vand.u32 %v473, 65535
    %v497 = vshrl.u32 %v473, 16
    %v498 = vand.u32 %v468, 65535
    %v499 = vshrl.u32 %v468, 16
    %v500 = vmul.u32 %v496, %v498
    %v501 = vmul.u32 %v496, %v499
    %v502 = vmul.u32 %v497, %v498
    %v503 = vmul.u32 %v497, %v499
    %v504 = vshll.u32 %v501, 16
    %v505 = vshrl.u32 %v501, 16
    %v506 = vshll.u32 %v502, 16
    %v507 = vshrl.u32 %v502, 16
    %vm508 = vc.u32 %v500, %v504
    %v509 = vsel %vm508, 1, 0
    %v510 = vadd.s32 %v500, %v504
    %v511 = vadd.s32 %v503, %v509
    %vm512 = vc.u32 %v510, %v506
    %v513 = vsel %vm512, 1, 0
    %v514 = vadd.s32 %v510, %v506
    %v515 = vadd.s32 %v511, %v513
    %v516 = vadd.s32 %v515, %v505
    %v517 = vadd.s32 %v516, %v507
    %v518 = vmul.u32 %v473, %v464
    %v519 = vadd.s32 %v495, %v514
    %vm520 = vc.u32 %v495, %v514
    %v521 = vadd.s32 %v517, 1
    %v522 = vsel %vm520, %v521, %v517
    %v523 = vadd.s32 %v518, %v522
    %v524 = vadd.s32 %v523, 536870912
    %v525 = vshrl.u32 %v524, 30
    %v526 = vshll.u32 %v525, 30
    %v527 = vsub.s32 %v523, %v526
    %vm528 = vcmp.lt.s32.totalorder %v527, 0
    %v529 = vsub.s32 0, %v527
    %v530 = vsel %vm528, %v529, %v527
    %v531 = vclz %v530
    %v532 = vsub.s32 %v531, 2
    %vm533 = vcmp.gt.s32.totalorder 0, %v532
    %v534 = vsel %vm533, 0, %v532
    %v535 = vsub.s32 32, %v534
    %v536 = vshll.u32 %v527, %v534
    %v537 = vshrl.u32 %v519, %v535
    %v538 = vor.u32 %v536, %v537
    %v539 = vsub.s32 4294967266, %v534
    %v540 = vadd.s32 %v539, 127
    %v541 = vshll.u32 %v540, 23
    %v542 = vor.u32 4788187, %v541
    %v543 = vand.u32 2147483647, %v542
    %v545 = vcvt.s32.f32 %v538
    %v546 = vmul.f32 %v545, %v543
    %v547 = vxor.u32 %v546, 2147483648
    %v548 = vsel %vm427, %v547, %v546
    %v549 = vsub.s32 4, %v525
    %v550 = vsel %vm427, %v549, %v525
    %v551 = vsel %vm426, %v238, %v548
    %v552 = vsel %vm426, 0, %v550
    %v553 = vmul.f32 %v551, %v551
    %v554 = vmul.f32 %v553, -0.001358992
    %v555 = vadd.f32 %v554, 0.041655596
    %v556 = vmul.f32 %v553, %v555
    %v557 = vadd.f32 %v556, -0.4999988
    %v558 = vmul.f32 %v553, %v557
    %v559 = vadd.f32 1.0, %v558
    %v560 = vmul.f32 %v551, %v551
    %v561 = vmul.f32 %v560, -0.00019511016
    %v562 = vadd.f32 %v561, 0.008332121
    %v563 = vmul.f32 %v560, %v562
    %v564 = vadd.f32 %v563, -0.16666654
    %v565 = vmul.f32 %v560, %v564
    %v566 = vadd.f32 %v565, 1.0
    %v567 = vmul.f32 %v566, %v551
    %vm568 = vweird.f32 %v238
    %v569 = vadd.s32 %v552, 3
    %v570 = vand.u32 %v569, 3
    %vm571 = vcmp.lt.s32.totalorder %v570, 2
    %vm572 = vcmp.eq.s32.totalorder %v570, 0
    %v573 = vxor.u32 %v567, 2147483648
    %v574 = vsel %vm572, %v559, %v573
    %vm575 = vcmp.eq.s32.totalorder %v570, 2
    %v576 = vxor.u32 %v559, 2147483648
    %v577 = vsel %vm575, %v576, %v567
    %v578 = vsel %vm571, %v574, %v577
    %v579 = vsel %vm568, nan, %v578
    %v580 = vadd.f32 %v579, %v423
    %581 = vst [vmem:[#allocation7] sm:$0xff] %v580
    // Predicated region
    $region18: #{tpu_custom_call.1} parent=1 // pred_check
      _
    $region19: #{tpu_custom_call.1} parent=1 // pred_check_branch
      %583 = sbr.rel (0) target = $region21
    $region20: #{tpu_custom_call.1} parent=1 // pred_region
      %585 = vsyncadd [#allocation4], 0
      %s587 = sshll.u32 [#allocation7], 4
      %s588 = int_to_ptr.vmem [resolvable:$true] %s587
      %s589 = sshll.u32 %s2, 4
      %s590 = int_to_ptr.hbm [resolvable:$true] %s589
      %592 = dma.vmem_to_hbm [thread:$0]  %s588, 128, %s590, [#allocation4]
    $region21: #{tpu_custom_call.1} parent=1 // pred_fallthru
      _
    // Predicated region
    $region22: #{tpu_custom_call.1} parent=1 // pred_check
      _
    $region23: #{tpu_custom_call.1} parent=1 // pred_check_branch
      %594 = sbr.rel (0) target = $region25
    $region24: #{tpu_custom_call.1} parent=1 // pred_region
      %596 = dma.done [#allocation4], 128
    $region25: #{tpu_custom_call.1} parent=1 // pred_fallthru
      _
    %597 = vsyncpa [#allocation3], 1
    %598 = vsyncpa [#allocation6], 1
    %599 = vsyncpa [#allocation4], 1

</llo_original>
